<compile_context>
chip_gen: v6e
topology: v6e:2x2x1
jax: 0.10.0
libtpu: 0.0.40
codegen_flags: <defaults>
</compile_context>

<pallas_src>
import jax
import jax.numpy as jnp
from jax.experimental import pallas as pl
from jax.experimental.pallas import tpu as pltpu


_TARGET_BLOCK_BYTES = 4 * 1024 * 1024
_VMEM_LIMIT_BYTES = 48 * 1024 * 1024


def normalize_kernel(mean_ref, inv_std_ref, x_ref, o_ref):
    # mean_ref / inv_std_ref: (Cb, 1) f32 VMEM tiles -> broadcast over lanes.
    x = x_ref[...].astype(jnp.float32)
    o_ref[...] = ((x - mean_ref[...]) * inv_std_ref[...]).astype(o_ref.dtype)


def _choose_cb(desired, nc, sub):
    """Block extent along the fused N*C axis.

    Must be a multiple of the sublane packing (8/16/32 for 4/2/1-byte dtypes)
    or equal to the full extent NC (always legal).
    """
    if desired >= nc or nc <= sub:
        return nc
    return max(sub, (desired // sub) * sub)


def _choose_tiles(nc, hw, itemsize, target_bytes=_TARGET_BLOCK_BYTES):
    """Pick (Cb, Lb) for blocks of the (NC, HW) view.

    Lb is a multiple of 128 (lane-dense; ragged final block is masked), Cb is a
    sublane multiple or the full NC extent. Tiles target ~`target_bytes`.
    """
    sub = {4: 8, 2: 16, 1: 32}.get(itemsize, 8)
    lanes_hw = ((hw + 127) // 128) * 128          # HW rounded up to 128 lanes
    row_bytes = lanes_hw * itemsize               # one channel's padded slab

    if row_bytes <= target_bytes:
        # Whole spatial extent per channel; pack channels to fill the budget.
        lb = lanes_hw
        desired = max(1, target_bytes // row_bytes)
        # Keep >=4 channel-blocks when the tensor is big enough: load-balances
        # the two v7x TensorCores and gives the pipeline steps to overlap.
        if nc * row_bytes >= 2 * target_bytes:
            desired = min(desired, (nc + 3) // 4)
        cb = _choose_cb(desired, nc, sub)
    else:
        # A single channel already exceeds the budget: take a sublane-group of
        # channels and chunk the flattened spatial axis in multiples of 128.
        cb = _choose_cb(sub, nc, sub)
        lb = (target_bytes // (cb * itemsize)) // 128 * 128
        lb = max(128, min(lb, lanes_hw))
    return cb, lb


def normalize(x, mean, std):
    """(x - mean[None,:,None,None]) / std[None,:,None,None] for NCHW x."""
    N, C, H, W = x.shape
    NC = N * C
    HW = H * W
    itemsize = jnp.dtype(x.dtype).itemsize

    # Channel statistics stay in float32; the division is hoisted out entirely
    # (the kernel does a single subtract + multiply per element).
    mean_f32 = jnp.asarray(mean, dtype=jnp.float32).reshape(C)
    inv_std_f32 = (1.0 / jnp.asarray(std, dtype=jnp.float32)).reshape(C)
    # Per-(n, c) stats along the fused batch*channel axis; trailing lane dim of
    # 1 so they broadcast against (Cb, Lb) tiles inside the kernel.
    mean_nc = jnp.tile(mean_f32, N).reshape(NC, 1)
    inv_std_nc = jnp.tile(inv_std_f32, N).reshape(NC, 1)

    # Free reshape for contiguous NCHW: fused (batch*channel, spatial) view.
    x2 = x.reshape(NC, HW)

    cb, lb = _choose_tiles(NC, HW, itemsize)
    grid = (pl.cdiv(NC, cb), pl.cdiv(HW, lb))

    out = pl.pallas_call(
        normalize_kernel,
        out_shape=jax.ShapeDtypeStruct((NC, HW), x.dtype),
        grid_spec=pltpu.PrefetchScalarGridSpec(
            num_scalar_prefetch=0,
            grid=grid,
            in_specs=[
                pl.BlockSpec((cb, 1), lambda i, j: (i, 0)),   # mean
                pl.BlockSpec((cb, 1), lambda i, j: (i, 0)),   # 1/std
                pl.BlockSpec((cb, lb), lambda i, j: (i, j)),  # x
            ],
            out_specs=pl.BlockSpec((cb, lb), lambda i, j: (i, j)),
        ),
        compiler_params=pltpu.CompilerParams(
            dimension_semantics=("parallel", "parallel"),
            vmem_limit_bytes=_VMEM_LIMIT_BYTES,
        ),
    )(mean_nc, inv_std_nc, x2)
    return out.reshape(N, C, H, W)


def _reference(x, mean, std):
    mean = jnp.asarray(mean, dtype=x.dtype)
    std = jnp.asarray(std, dtype=x.dtype)
    return (x - mean[None, :, None, None]) / std[None, :, None, None]


if __name__ == "__main__":
    key = jax.random.PRNGKey(0)

    # Primary small case (HW a multiple of 128).
    N, C, H, W = 2, 4, 16, 16
    mean = jnp.array([0.485, 0.456, 0.406, 0.500], dtype=jnp.float32)
    std = jnp.array([0.229, 0.224, 0.225, 0.250], dtype=jnp.float32)
    k0, k1 = jax.random.split(key)
    x = jax.random.normal(k0, (N, C, H, W), dtype=jnp.float32)

    out = jax.block_until_ready(normalize(x, mean, std))
    ref = _reference(x, mean, std)
    assert out.shape == ref.shape and out.dtype == ref.dtype
    assert jnp.allclose(out, ref, rtol=1e-5, atol=1e-6)

    # Odd spatial size (HW % 128 != 0): exercises the masked ragged lane block.
    N2, C2, H2, W2 = 2, 3, 10, 10
    mean2 = jnp.array([0.485, 0.456, 0.406], dtype=jnp.float32)
    std2 = jnp.array([0.229, 0.224, 0.225], dtype=jnp.float32)
    x2 = jax.random.normal(k1, (N2, C2, H2, W2), dtype=jnp.float32)

    out2 = jax.block_until_ready(normalize(x2, mean2, std2))
    ref2 = _reference(x2, mean2, std2)
    assert out2.shape == ref2.shape and out2.dtype == ref2.dtype
    assert jnp.allclose(out2, ref2, rtol=1e-5, atol=1e-6)

    print("KERNEL_OK")
</pallas_src>

<mosaic_0001>
module attributes {stable_mosaic.version = 11 : i64} {
  func.func @normalize_kernel(%arg0: i32, %arg1: i32, %arg2: memref<8x1xf32, #tpu.memory_space<vmem>>, %arg3: memref<8x1xf32, #tpu.memory_space<vmem>>, %arg4: memref<8x256xf32, #tpu.memory_space<vmem>>, %arg5: memref<8x256xf32, #tpu.memory_space<vmem>>) attributes {dimension_semantics = [#tpu.dimension_semantics<parallel>, #tpu.dimension_semantics<parallel>], iteration_bounds = array<i64: 1, 1>, scalar_prefetch = 0 : i64, scratch_operands = 0 : i64, tpu.core_type = #tpu.core_type<tc>, window_params = [{transform_indices = @transform_0, window_bounds = array<i64: 8, 1>}, {transform_indices = @transform_1, window_bounds = array<i64: 8, 1>}, {transform_indices = @transform_2, window_bounds = array<i64: 8, 256>}, {transform_indices = @transform_3, window_bounds = array<i64: 8, 256>}]} {
    %c0 = arith.constant 0 : index
    %c0_0 = arith.constant 0 : index
    %0 = vector.load %arg4[%c0, %c0_0] : memref<8x256xf32, #tpu.memory_space<vmem>>, vector<8x256xf32>
    %c0_1 = arith.constant 0 : index
    %c0_2 = arith.constant 0 : index
    %1 = vector.load %arg2[%c0_1, %c0_2] : memref<8x1xf32, #tpu.memory_space<vmem>>, vector<8x1xf32>
    %2 = vector.broadcast %1 : vector<8x1xf32> to vector<8x256xf32>
    %3 = arith.subf %0, %2 : vector<8x256xf32>
    %c0_3 = arith.constant 0 : index
    %c0_4 = arith.constant 0 : index
    %4 = vector.load %arg3[%c0_3, %c0_4] : memref<8x1xf32, #tpu.memory_space<vmem>>, vector<8x1xf32>
    %5 = vector.broadcast %4 : vector<8x1xf32> to vector<8x256xf32>
    %6 = arith.mulf %3, %5 : vector<8x256xf32>
    %c0_5 = arith.constant 0 : index
    %c0_6 = arith.constant 0 : index
    %7 = vector.load %arg5[%c0_5, %c0_6] : memref<8x256xf32, #tpu.memory_space<vmem>>, vector<8x256xf32>
    tpu.vector_store %arg5[%c0_5, %c0_6], %6 {strides = array<i32>} : memref<8x256xf32, #tpu.memory_space<vmem>>, vector<8x256xf32>,
    return
  }
  func.func @transform_0(%arg0: i32, %arg1: i32) -> (i32, i32) {
    %c0_i32 = arith.constant 0 : i32
    %c0_i32_0 = arith.constant 0 : i32
    return %arg0, %c0_i32 : i32, i32
  }
  func.func @transform_1(%arg0: i32, %arg1: i32) -> (i32, i32) {
    %c0_i32 = arith.constant 0 : i32
    %c0_i32_0 = arith.constant 0 : i32
    return %arg0, %c0_i32 : i32, i32
  }
  func.func @transform_2(%arg0: i32, %arg1: i32) -> (i32, i32) {
    %c0_i32 = arith.constant 0 : i32
    return %arg0, %arg1 : i32, i32
  }
  func.func @transform_3(%arg0: i32, %arg1: i32) -> (i32, i32) {
    %c0_i32 = arith.constant 0 : i32
    return %arg0, %arg1 : i32, i32
  }
}

</mosaic_0001>

<llo_original>
// kernel: tpu_custom_call.1
$region0: #{tpu_custom_call.1}
  #allocation0 [shape = 'u32[]', space=smem, size = 0x4, offset = 0x4, fixed_abs, tag = 'smem constant byte address 0x4 - core index']
  #allocation1 [shape = 'u32[144,128]{1,0:T(1,128)}', space=vmem, size = 0x12000, scoped, tag = 'internal scratch']
  %s0 = inlined_call_operand.vmem [shape: f32[8,1], index: 0, kind: input, shape index: {}]
  %s1 = inlined_call_operand.vmem [shape: f32[8,1], index: 1, kind: input, shape index: {}]
  %s2 = inlined_call_operand.vmem [shape: f32[8,256], index: 2, kind: input, shape index: {}]
  %s3 = inlined_call_operand.hbm [shape: f32[8,256], index: 3, kind: output, shape index: {}]
  %s4 = sld [smem:[#allocation0]]
  $region22: #{tpu_custom_call.1} parent=0
    _
  %s6 = ssub.s32 1, %s4
  %s7 = scalar_select 0, %s6, %s4
  $region1: #{tpu_custom_call.1} parent=0
    #allocation2 [shape = 'u8[8192]{0}', space=vmem, size = 0x2000, scoped, tag = 'output window, operand 0, single buffered']
    #allocation3 [shape = 's32[1]{0}', space=sflag, size = 0x4, scoped, tag = 'scoped memory for tpu_custom_call.1']
    %8 = vsyncpa [#allocation3], 0
    // Predicated region
    $region2: #{tpu_custom_call.1} parent=1 // pred_check
      _
    $region3: #{tpu_custom_call.1} parent=1 // pred_check_branch
      %10 = sbr.rel (0) target = $region5
    $region4: #{tpu_custom_call.1} parent=1 // pred_region
      _
    $region5: #{tpu_custom_call.1} parent=1 // pred_fallthru
      _
    // Predicated region
    $region6: #{tpu_custom_call.1} parent=1 // pred_check
      _
    $region7: #{tpu_custom_call.1} parent=1 // pred_check_branch
      %12 = sbr.rel (0) target = $region9
    $region8: #{tpu_custom_call.1} parent=1 // pred_region
      _
    $region9: #{tpu_custom_call.1} parent=1 // pred_fallthru
      _
    // Predicated region
    $region10: #{tpu_custom_call.1} parent=1 // pred_check
      _
    $region11: #{tpu_custom_call.1} parent=1 // pred_check_branch
      %14 = sbr.rel (0) target = $region13
    $region12: #{tpu_custom_call.1} parent=1 // pred_region
      _
    $region13: #{tpu_custom_call.1} parent=1 // pred_fallthru
      _
    %v15 = vld [vmem:[%s2] sm:$0xff]
    %v16 = vld [vmem:[%s2 + $0x8] sm:$0xff]
    %v17 = vld [vmem:[%s0] sm:$0xff]
    %19 = vset.pattern.permute.xlu0 0
    %20 = vperm.xlu0 %19, %v17
    %v21 = vpop.permute.xlu0 %20
    %v23 = vsub.f32 %v15, %v21
    %v24 = vsub.f32 %v16, %v21
    %v25 = vld [vmem:[%s1] sm:$0xff]
    %27 = vset.pattern.permute.xlu0 0
    %28 = vperm.xlu0 %27, %v25
    %v29 = vpop.permute.xlu0 %28
    %v31 = vmul.f32 %v23, %v29
    %v32 = vmul.f32 %v24, %v29
    %33 = vst [vmem:[#allocation2] sm:$0xff] %v31
    %34 = vst [vmem:[#allocation2 + $0x8] sm:$0xff] %v32
    // Predicated region
    $region14: #{tpu_custom_call.1} parent=1 // pred_check
      _
    $region15: #{tpu_custom_call.1} parent=1 // pred_check_branch
      %36 = sbr.rel (0) target = $region17
    $region16: #{tpu_custom_call.1} parent=1 // pred_region
      %s38 = ssub.s32 256, 256
      %39 = vsyncadd [#allocation3], %s38
      %s41 = sshll.u32 [#allocation2], 4
      %s42 = int_to_ptr.vmem [resolvable:$true] %s41
      %44 = dma.vmem_to_hbm [thread:$0]  %s42, 256, %s3, [#allocation3]
    $region17: #{tpu_custom_call.1} parent=1 // pred_fallthru
      _
    // Predicated region
    $region18: #{tpu_custom_call.1} parent=1 // pred_check
      _
    $region19: #{tpu_custom_call.1} parent=1 // pred_check_branch
      %46 = sbr.rel (0) target = $region21
    $region20: #{tpu_custom_call.1} parent=1 // pred_region
      %47 = dma.done [#allocation3], 256
    $region21: #{tpu_custom_call.1} parent=1 // pred_fallthru
      _
    %48 = vsyncpa [#allocation3], 1

</llo_original>
